<compile_context>
chip_gen: v6e
topology: v6e:2x2x1
jax: 0.10.0
libtpu: 0.0.40
codegen_flags: <defaults>
</compile_context>

<pallas_src>
import jax
import jax.numpy as jnp
from jax import lax
from jax.experimental import pallas as pl
from jax.experimental.pallas import tpu as pltpu


BN_EPS = 1e-5


# --------------------------------------------------------------------------
# Pass 1: accumulate shifted x statistics  sum(x-c), (x-c)(x-c)^T
#          per batch-block (parallel axis), reduced over length blocks.
# --------------------------------------------------------------------------
def _stats_kernel(x_ref, c_ref, s1_ref, s2_ref):
    # x_ref : (tB, C_in, tL)   native NCL tile of x (input dtype, no f32 cast)
    # c_ref : (C_in, 1)        per-channel shift (input dtype)
    # s1_ref: (1, 1, C_in)     partial sum of (x - c) for this batch block
    # s2_ref: (1, C_in, C_in)  partial sum of (x - c)(x - c)^T for this block
    @pl.when(pl.program_id(1) == 0)
    def _():
        s1_ref[...] = jnp.zeros_like(s1_ref)
        s2_ref[...] = jnp.zeros_like(s2_ref)

    c = c_ref[...]                                        # (C_in, 1)
    ones_row = jnp.ones((1, x_ref.shape[2]), x_ref.dtype)  # hoisted (no re-bcast)

    for i in range(x_ref.shape[0]):       # static unroll over the batch tile
        xc = x_ref[i] - c                 # (C_in, tL), stays in input dtype

        # Lane-sum via a ones-row matmul on the (otherwise idle) MXU instead
        # of a cross-lane XLU reduction.
        s1_ref[0] += lax.dot_general(
            ones_row, xc, (((1,), (1,)), ((), ())),
            preferred_element_type=jnp.float32)           # (1, C_in)

        # (x - c) (x - c)^T, contracting the lane axis of both operands.
        s2_ref[0] += lax.dot_general(
            xc, xc, (((1,), (1,)), ((), ())),
            preferred_element_type=jnp.float32)           # (C_in, C_in)


# --------------------------------------------------------------------------
# Pass 2: apply the folded conv+BN+ReLU:  out = relu(x^T @ W' + b')
# --------------------------------------------------------------------------
def _apply_kernel(x_ref, w_ref, b_ref, o_ref):
    # x_ref: (tB, C_in, tL)   native NCL tile of x (input dtype)
    # w_ref: (C_in, C_out)    BN-folded weight in x dtype (feeds MXU directly)
    # b_ref: (1, C_out)       BN-folded affine offset (f32)
    # o_ref: (tB, tL, C_out)  output tile, last dim = full C_out (no pad)
    w = w_ref[...]
    b = b_ref[...]
    for i in range(x_ref.shape[0]):       # static unroll over the batch tile
        # x_i^T @ W' via the MXU transposed-lhs operand path.
        # TODO(synk): verify via pl.lower_as_mlir that no per-tile vxpose is
        # emitted; if it is, switch to pl.dot(x_ref[i], w, trans_a=True).
        y = lax.dot_general(
            x_ref[i], w, (((0,), (0,)), ((), ())),
            preferred_element_type=jnp.float32)           # (tL, C_out)
        o_ref[i] = jnp.maximum(y + b, 0.0).astype(o_ref.dtype)


# --------------------------------------------------------------------------
# Tiling helpers (generation-aware)
# --------------------------------------------------------------------------
def _vmem_capacity_bytes():
    try:
        return int(pltpu.get_tpu_info().vmem_capacity_bytes)
    except Exception:
        return 128 << 20


def _divisor_at_most(n, cap):
    d = 1
    for c in range(1, min(n, cap) + 1):
        if n % c == 0:
            d = c
    return d


def _choose_tiles(B, L, vmem_cap):
    # Length tile: largest multiple-of-128 divisor of L (lane constraint),
    # capped so the out tile stays a few MiB (smaller cap on 64 MiB parts).
    len_cap = 8192 if vmem_cap >= (96 << 20) else 4096
    if L % 128 == 0:
        tL = 128
        while tL * 2 <= len_cap and L % (tL * 2) == 0:
            tL *= 2
    else:
        tL = L                      # full-extent block is always legal
    # Small-L regime: tile over batch too, so each grid step moves enough
    # bytes to amortize the ~0.35us/step pipeline overhead.
    tB = 1 if tL >= 1024 else _divisor_at_most(B, 8)
    return tB, tL


def _vmem_limit_bytes(tB, C_in, tL, C_out, x_bytes, out_bytes, vmem_cap):
    cin_p = -(-C_in // 8) * 8                   # sublane padding
    tl_lane = max(-(-tL // 128) * 128, 128)     # lane padding of the x tile
    cout_lane = max(-(-C_out // 128) * 128, 128)
    need = (2 * tB * cin_p * tl_lane * x_bytes              # x double-buffer
            + 2 * tB * max(tL, 8) * cout_lane * out_bytes   # out double-buffer
            + 2 * cin_p * cout_lane * 4                     # folded W
            + 2 * 8 * cout_lane * 4                         # folded bias row
            + 4 * cin_p * max(cin_p, 128) * 4               # stats accumulators
            + (1 << 20))                                    # slack
    # Cap at ~0.8x physical capacity (64 MiB on v7x, 128 MiB on v5e/v6e).
    return int(min(int(0.8 * vmem_cap), max(32 << 20, 2 * need)))


# --------------------------------------------------------------------------
# Wrapper (jitted: two pallas_calls + fold dispatch as one executable)
# --------------------------------------------------------------------------
@jax.jit
def embedding_module_forward(x, weight, bias, gamma, beta):
    """x: (B, C_in, L) NCL.  Returns (B, L, C_out) in x.dtype."""
    B, C_in, L = x.shape
    C_out = weight.shape[0]
    out_dtype = x.dtype                         # bf16 in -> bf16 out (halves writes)
    x_bytes = x.dtype.itemsize
    out_bytes = jnp.dtype(out_dtype).itemsize

    vmem_cap = _vmem_capacity_bytes()
    tB, tL = _choose_tiles(B, L, vmem_cap)
    n_b, n_l = B // tB, L // tL
    n_rows = B * L
    vmem_limit = _vmem_limit_bytes(tB, C_in, tL, C_out, x_bytes, out_bytes, vmem_cap)

    # Cheap per-channel shift (first-tile mean) for numerically stable
    # covariance accumulation; the exact (possibly rounded) value the kernel
    # sees is re-used in the fold below.
    c = jnp.mean(x[0, :, : min(L, 128)].astype(jnp.float32), axis=1)  # (C_in,)
    c_col = c.astype(x.dtype).reshape(C_in, 1)

    # ---- pass 1: per-batch-block partial statistics of (x - c) ----
    s1p, s2p = pl.pallas_call(
        _stats_kernel,
        out_shape=(jax.ShapeDtypeStruct((n_b, 1, C_in), jnp.float32),
                   jax.ShapeDtypeStruct((n_b, C_in, C_in), jnp.float32)),
        grid=(n_b, n_l),
        in_specs=[pl.BlockSpec((tB, C_in, tL), lambda i, l: (i, 0, l)),
                  pl.BlockSpec((C_in, 1), lambda i, l: (0, 0))],
        out_specs=(pl.BlockSpec((1, 1, C_in), lambda i, l: (i, 0, 0)),
                   pl.BlockSpec((1, C_in, C_in), lambda i, l: (i, 0, 0))),
        compiler_params=pltpu.CompilerParams(
            # batch-block axis "parallel": each TensorCore (v7x) accumulates
            # into its own partial slots; the length axis is the reduction.
            dimension_semantics=("parallel", "arbitrary"),
            vmem_limit_bytes=vmem_limit),
    )(x, c_col)

    # ---- fold BN (+ conv bias) into a single affine, in XLA (tiny arrays) ----
    s1 = jnp.sum(s1p, axis=0)[0]                       # (C_in,)  sum(x - c)
    s2 = jnp.sum(s2p, axis=0)                          # (C_in, C_in)
    c32 = c_col.astype(jnp.float32)[:, 0]              # exact shift the kernel used
    d = s1 / n_rows                                    # mean of (x - c)
    mean_x = c32 + d                                   # (C_in,)
    cov_x = s2 / n_rows - jnp.outer(d, d)              # shift-invariant covariance

    w2 = weight.reshape(C_out, C_in).astype(jnp.float32)      # (C_out, C_in)
    mean_y = w2 @ mean_x + bias                                # (C_out,)
    var_y = jnp.einsum("ck,kl,cl->c", w2, cov_x, w2)           # biased variance
    scale = gamma * lax.rsqrt(var_y + BN_EPS)                  # (C_out,)
    w_fold = (w2 * scale[:, None]).T.astype(x.dtype)           # (C_in, C_out)
    b_fold = (beta + (bias - mean_y) * scale).astype(jnp.float32).reshape(1, C_out)

    # ---- pass 2: relu(x^T @ W' + b'), written straight to (B, L, C_out) ----
    out = pl.pallas_call(
        _apply_kernel,
        out_shape=jax.ShapeDtypeStruct((B, L, C_out), out_dtype),
        grid=(n_b, n_l),
        in_specs=[pl.BlockSpec((tB, C_in, tL), lambda i, l: (i, 0, l)),
                  pl.BlockSpec((C_in, C_out), lambda i, l: (0, 0)),
                  pl.BlockSpec((1, C_out), lambda i, l: (0, 0))],
        out_specs=pl.BlockSpec((tB, tL, C_out), lambda i, l: (i, l, 0)),
        compiler_params=pltpu.CompilerParams(
            dimension_semantics=("parallel", "parallel"),
            vmem_limit_bytes=vmem_limit),
    )(x, w_fold, b_fold)

    return out


if __name__ == "__main__":
    # EmbeddingModule(in_chans=17, out_chans=80)
    in_chans, out_chans = 17, 80

    key = jax.random.PRNGKey(0)
    k_x, k_w, k_b, k_x2 = jax.random.split(key, 4)

    # PyTorch shapes: Conv1d weight (out, in, 1), bias (out,)
    weight = jax.random.normal(k_w, (out_chans, in_chans, 1), jnp.float32) * 0.1
    bias = jax.random.normal(k_b, (out_chans,), jnp.float32) * 0.1
    gamma = jnp.ones((out_chans,), jnp.float32)    # BatchNorm1d default init
    beta = jnp.zeros((out_chans,), jnp.float32)

    def reference(xin):
        # conv1x1 -> training-mode BN -> relu -> transpose(2,1)
        y = jnp.einsum("bcl,oc->bol", xin, weight[..., 0]) + bias[None, :, None]
        mean = jnp.mean(y, axis=(0, 2), keepdims=True)
        var = jnp.mean((y - mean) ** 2, axis=(0, 2), keepdims=True)
        y_bn = (y - mean) / jnp.sqrt(var + BN_EPS) * gamma[None, :, None] \
               + beta[None, :, None]
        return jnp.transpose(jnp.maximum(y_bn, 0.0), (0, 2, 1))

    # Small demo shape (NCL like PyTorch Conv1d): exercises the batch-tiled path.
    x = jax.random.normal(k_x, (2, in_chans, 16), jnp.float32)
    out = jax.block_until_ready(embedding_module_forward(x, weight, bias, gamma, beta))
    assert out.shape == (2, 16, out_chans), out.shape
    ref = reference(x)
    err = float(jnp.max(jnp.abs(out - ref)))
    assert jnp.allclose(out, ref, atol=1e-3, rtol=1e-3), err

    # Second shape: multi-tile length reduction + >1 batch-block stat partials.
    x2 = jax.random.normal(k_x2, (10, in_chans, 384), jnp.float32)
    out2 = jax.block_until_ready(embedding_module_forward(x2, weight, bias, gamma, beta))
    assert out2.shape == (10, 384, out_chans), out2.shape
    ref2 = reference(x2)
    err2 = float(jnp.max(jnp.abs(out2 - ref2)))
    assert jnp.allclose(out2, ref2, atol=1e-3, rtol=1e-3), err2

    print("KERNEL_OK")
</pallas_src>

<mosaic_0001>
module attributes {stable_mosaic.version = 11 : i64} {
  func.func @_stats_kernel(%arg0: i32, %arg1: i32, %arg2: memref<2x17x16xf32, #tpu.memory_space<vmem>>, %arg3: memref<17x1xf32, #tpu.memory_space<vmem>>, %arg4: memref<1x1x17xf32, #tpu.memory_space<vmem>>, %arg5: memref<1x17x17xf32, #tpu.memory_space<vmem>>) attributes {dimension_semantics = [#tpu.dimension_semantics<parallel>, #tpu.dimension_semantics<arbitrary>], iteration_bounds = array<i64: 1, 1>, scalar_prefetch = 0 : i64, scratch_operands = 0 : i64, tpu.core_type = #tpu.core_type<tc>, window_params = [{transform_indices = @transform_0, window_bounds = array<i64: 2, 17, 16>}, {pipeline_mode = #tpu.pipeline_mode<synchronous>, transform_indices = @transform_1, window_bounds = array<i64: 17, 1>}, {transform_indices = @transform_2, window_bounds = array<i64: 1, 1, 17>}, {transform_indices = @transform_3, window_bounds = array<i64: 1, 17, 17>}]} {
    %c0_i32 = arith.constant 0 : i32
    %0 = arith.cmpi eq, %arg1, %c0_i32 : i32
    %1 = arith.extui %0 : i1 to i32
    %c0_i32_0 = arith.constant 0 : i32
    %2 = arith.cmpi ne, %1, %c0_i32_0 : i32
    scf.if %2 {
      %cst_35 = arith.constant 0.000000e+00 : f32
      %41 = vector.broadcast %cst_35 : f32 to vector<1x1x17xf32>
      %c0_36 = arith.constant 0 : index
      %c0_37 = arith.constant 0 : index
      %c0_38 = arith.constant 0 : index
      %42 = vector.load %arg4[%c0_36, %c0_37, %c0_38] : memref<1x1x17xf32, #tpu.memory_space<vmem>>, vector<1x1x17xf32>
      tpu.vector_store %arg4[%c0_36, %c0_37, %c0_38], %41 {strides = array<i32>} : memref<1x1x17xf32, #tpu.memory_space<vmem>>, vector<1x1x17xf32>,
      %cst_39 = arith.constant 0.000000e+00 : f32
      %43 = vector.broadcast %cst_39 : f32 to vector<1x17x17xf32>
      %c0_40 = arith.constant 0 : index
      %c0_41 = arith.constant 0 : index
      %c0_42 = arith.constant 0 : index
      %44 = vector.load %arg5[%c0_40, %c0_41, %c0_42] : memref<1x17x17xf32, #tpu.memory_space<vmem>>, vector<1x17x17xf32>
      tpu.vector_store %arg5[%c0_40, %c0_41, %c0_42], %43 {strides = array<i32>} : memref<1x17x17xf32, #tpu.memory_space<vmem>>, vector<1x17x17xf32>,
    } else {
    }
    %c0 = arith.constant 0 : index
    %c0_1 = arith.constant 0 : index
    %3 = vector.load %arg3[%c0, %c0_1] : memref<17x1xf32, #tpu.memory_space<vmem>>, vector<17x1xf32>
    %cst = arith.constant 1.000000e+00 : f32
    %4 = vector.broadcast %cst : f32 to vector<1x16xf32>
    %c0_2 = arith.constant 0 : index
    %c0_3 = arith.constant 0 : index
    %c0_4 = arith.constant 0 : index
    %5 = vector.load %arg2[%c0_2, %c0_3, %c0_4] : memref<2x17x16xf32, #tpu.memory_space<vmem>>, vector<1x17x16xf32>
    %6 = vector.shape_cast %5 : vector<1x17x16xf32> to vector<17x16xf32>
    %7 = vector.broadcast %3 : vector<17x1xf32> to vector<17x16xf32>
    %8 = arith.subf %6, %7 : vector<17x16xf32>
    %c0_5 = arith.constant 0 : index
    %c0_6 = arith.constant 0 : index
    %c0_7 = arith.constant 0 : index
    %9 = vector.load %arg4[%c0_5, %c0_6, %c0_7] : memref<1x1x17xf32, #tpu.memory_space<vmem>>, vector<1x1x17xf32>
    %10 = vector.shape_cast %9 : vector<1x1x17xf32> to vector<1x17xf32>
    %cst_8 = arith.constant dense<0.000000e+00> : vector<1x17xf32>
    %11 = tpu.matmul %4, %8, %cst_8 {dimension_numbers = #tpu.dot_dimension_numbers<[1], [1], [0], [0], [0, 0, 1, 0], [], []>} : vector<1x16xf32>, vector<17x16xf32>, vector<1x17xf32> -> vector<1x17xf32>
    %12 = arith.addf %10, %11 : vector<1x17xf32>
    %c0_9 = arith.constant 0 : index
    %c0_10 = arith.constant 0 : index
    %c0_11 = arith.constant 0 : index
    %13 = vector.load %arg4[%c0_9, %c0_10, %c0_11] : memref<1x1x17xf32, #tpu.memory_space<vmem>>, vector<1x1x17xf32>
    %14 = vector.shape_cast %13 : vector<1x1x17xf32> to vector<1x17xf32>
    %15 = vector.shape_cast %12 : vector<1x17xf32> to vector<1x1x17xf32>
    tpu.vector_store %arg4[%c0_9, %c0_10, %c0_11], %15 {strides = array<i32>} : memref<1x1x17xf32, #tpu.memory_space<vmem>>, vector<1x1x17xf32>,
    %c0_12 = arith.constant 0 : index
    %c0_13 = arith.constant 0 : index
    %c0_14 = arith.constant 0 : index
    %16 = vector.load %arg5[%c0_12, %c0_13, %c0_14] : memref<1x17x17xf32, #tpu.memory_space<vmem>>, vector<1x17x17xf32>
    %17 = vector.shape_cast %16 : vector<1x17x17xf32> to vector<17x17xf32>
    %cst_15 = arith.constant dense<0.000000e+00> : vector<17x17xf32>
    %18 = tpu.matmul %8, %8, %cst_15 {dimension_numbers = #tpu.dot_dimension_numbers<[1], [1], [0], [0], [0, 0, 1, 0], [], []>} : vector<17x16xf32>, vector<17x16xf32>, vector<17x17xf32> -> vector<17x17xf32>
    %19 = arith.addf %17, %18 : vector<17x17xf32>
    %c0_16 = arith.constant 0 : index
    %c0_17 = arith.constant 0 : index
    %c0_18 = arith.constant 0 : index
    %20 = vector.load %arg5[%c0_16, %c0_17, %c0_18] : memref<1x17x17xf32, #tpu.memory_space<vmem>>, vector<1x17x17xf32>
    %21 = vector.shape_cast %20 : vector<1x17x17xf32> to vector<17x17xf32>
    %22 = vector.shape_cast %19 : vector<17x17xf32> to vector<1x17x17xf32>
    tpu.vector_store %arg5[%c0_16, %c0_17, %c0_18], %22 {strides = array<i32>} : memref<1x17x17xf32, #tpu.memory_space<vmem>>, vector<1x17x17xf32>,
    %c1 = arith.constant 1 : index
    %c0_19 = arith.constant 0 : index
    %c0_20 = arith.constant 0 : index
    %23 = vector.load %arg2[%c1, %c0_19, %c0_20] : memref<2x17x16xf32, #tpu.memory_space<vmem>>, vector<1x17x16xf32>
    %24 = vector.shape_cast %23 : vector<1x17x16xf32> to vector<17x16xf32>
    %25 = vector.broadcast %3 : vector<17x1xf32> to vector<17x16xf32>
    %26 = arith.subf %24, %25 : vector<17x16xf32>
    %c0_21 = arith.constant 0 : index
    %c0_22 = arith.constant 0 : index
    %c0_23 = arith.constant 0 : index
    %27 = vector.load %arg4[%c0_21, %c0_22, %c0_23] : memref<1x1x17xf32, #tpu.memory_space<vmem>>, vector<1x1x17xf32>
    %28 = vector.shape_cast %27 : vector<1x1x17xf32> to vector<1x17xf32>
    %cst_24 = arith.constant dense<0.000000e+00> : vector<1x17xf32>
    %29 = tpu.matmul %4, %26, %cst_24 {dimension_numbers = #tpu.dot_dimension_numbers<[1], [1], [0], [0], [0, 0, 1, 0], [], []>} : vector<1x16xf32>, vector<17x16xf32>, vector<1x17xf32> -> vector<1x17xf32>
    %30 = arith.addf %28, %29 : vector<1x17xf32>
    %c0_25 = arith.constant 0 : index
    %c0_26 = arith.constant 0 : index
    %c0_27 = arith.constant 0 : index
    %31 = vector.load %arg4[%c0_25, %c0_26, %c0_27] : memref<1x1x17xf32, #tpu.memory_space<vmem>>, vector<1x1x17xf32>
    %32 = vector.shape_cast %31 : vector<1x1x17xf32> to vector<1x17xf32>
    %33 = vector.shape_cast %30 : vector<1x17xf32> to vector<1x1x17xf32>
    tpu.vector_store %arg4[%c0_25, %c0_26, %c0_27], %33 {strides = array<i32>} : memref<1x1x17xf32, #tpu.memory_space<vmem>>, vector<1x1x17xf32>,
    %c0_28 = arith.constant 0 : index
    %c0_29 = arith.constant 0 : index
    %c0_30 = arith.constant 0 : index
    %34 = vector.load %arg5[%c0_28, %c0_29, %c0_30] : memref<1x17x17xf32, #tpu.memory_space<vmem>>, vector<1x17x17xf32>
    %35 = vector.shape_cast %34 : vector<1x17x17xf32> to vector<17x17xf32>
    %cst_31 = arith.constant dense<0.000000e+00> : vector<17x17xf32>
    %36 = tpu.matmul %26, %26, %cst_31 {dimension_numbers = #tpu.dot_dimension_numbers<[1], [1], [0], [0], [0, 0, 1, 0], [], []>} : vector<17x16xf32>, vector<17x16xf32>, vector<17x17xf32> -> vector<17x17xf32>
    %37 = arith.addf %35, %36 : vector<17x17xf32>
    %c0_32 = arith.constant 0 : index
    %c0_33 = arith.constant 0 : index
    %c0_34 = arith.constant 0 : index
    %38 = vector.load %arg5[%c0_32, %c0_33, %c0_34] : memref<1x17x17xf32, #tpu.memory_space<vmem>>, vector<1x17x17xf32>
    %39 = vector.shape_cast %38 : vector<1x17x17xf32> to vector<17x17xf32>
    %40 = vector.shape_cast %37 : vector<17x17xf32> to vector<1x17x17xf32>
    tpu.vector_store %arg5[%c0_32, %c0_33, %c0_34], %40 {strides = array<i32>} : memref<1x17x17xf32, #tpu.memory_space<vmem>>, vector<1x17x17xf32>,
    return
  }
  func.func @transform_0(%arg0: i32, %arg1: i32) -> (i32, i32, i32) {
    %c0_i32 = arith.constant 0 : i32
    %c0_i32_0 = arith.constant 0 : i32
    return %arg0, %c0_i32, %arg1 : i32, i32, i32
  }
  func.func @transform_1(%arg0: i32, %arg1: i32) -> (i32, i32) {
    %c0_i32 = arith.constant 0 : i32
    %c0_i32_0 = arith.constant 0 : i32
    %c0_i32_1 = arith.constant 0 : i32
    return %c0_i32, %c0_i32_0 : i32, i32
  }
  func.func @transform_2(%arg0: i32, %arg1: i32) -> (i32, i32, i32) {
    %c0_i32 = arith.constant 0 : i32
    %c0_i32_0 = arith.constant 0 : i32
    %c0_i32_1 = arith.constant 0 : i32
    return %arg0, %c0_i32, %c0_i32_0 : i32, i32, i32
  }
  func.func @transform_3(%arg0: i32, %arg1: i32) -> (i32, i32, i32) {
    %c0_i32 = arith.constant 0 : i32
    %c0_i32_0 = arith.constant 0 : i32
    %c0_i32_1 = arith.constant 0 : i32
    return %arg0, %c0_i32, %c0_i32_0 : i32, i32, i32
  }
}

module attributes {stable_mosaic.version = 11 : i64} {
  func.func @_apply_kernel(%arg0: i32, %arg1: i32, %arg2: memref<2x17x16xf32, #tpu.memory_space<vmem>>, %arg3: memref<17x80xf32, #tpu.memory_space<vmem>>, %arg4: memref<1x80xf32, #tpu.memory_space<vmem>>, %arg5: memref<2x16x80xf32, #tpu.memory_space<vmem>>) attributes {dimension_semantics = [#tpu.dimension_semantics<parallel>, #tpu.dimension_semantics<parallel>], iteration_bounds = array<i64: 1, 1>, scalar_prefetch = 0 : i64, scratch_operands = 0 : i64, tpu.core_type = #tpu.core_type<tc>, window_params = [{transform_indices = @transform_0, window_bounds = array<i64: 2, 17, 16>}, {pipeline_mode = #tpu.pipeline_mode<synchronous>, transform_indices = @transform_1, window_bounds = array<i64: 17, 80>}, {pipeline_mode = #tpu.pipeline_mode<synchronous>, transform_indices = @transform_2, window_bounds = array<i64: 1, 80>}, {transform_indices = @transform_3, window_bounds = array<i64: 2, 16, 80>}]} {
    %c0 = arith.constant 0 : index
    %c0_0 = arith.constant 0 : index
    %0 = vector.load %arg3[%c0, %c0_0] : memref<17x80xf32, #tpu.memory_space<vmem>>, vector<17x80xf32>
    %c0_1 = arith.constant 0 : index
    %c0_2 = arith.constant 0 : index
    %1 = vector.load %arg4[%c0_1, %c0_2] : memref<1x80xf32, #tpu.memory_space<vmem>>, vector<1x80xf32>
    %c0_3 = arith.constant 0 : index
    %c0_4 = arith.constant 0 : index
    %c0_5 = arith.constant 0 : index
    %2 = vector.load %arg2[%c0_3, %c0_4, %c0_5] : memref<2x17x16xf32, #tpu.memory_space<vmem>>, vector<1x17x16xf32>
    %3 = vector.shape_cast %2 : vector<1x17x16xf32> to vector<17x16xf32>
    %cst = arith.constant dense<0.000000e+00> : vector<16x80xf32>
    %4 = tpu.matmul %3, %0, %cst {dimension_numbers = #tpu.dot_dimension_numbers<[0], [0], [1], [1], [0, 1, 1, 1], [], []>} : vector<17x16xf32>, vector<17x80xf32>, vector<16x80xf32> -> vector<16x80xf32>
    %5 = vector.broadcast %1 : vector<1x80xf32> to vector<16x80xf32>
    %6 = arith.addf %4, %5 : vector<16x80xf32>
    %cst_6 = arith.constant 0.000000e+00 : f32
    %7 = vector.broadcast %cst_6 : f32 to vector<16x80xf32>
    %8 = arith.maximumf %6, %7 : vector<16x80xf32>
    %c0_7 = arith.constant 0 : index
    %c0_8 = arith.constant 0 : index
    %c0_9 = arith.constant 0 : index
    %9 = vector.load %arg5[%c0_7, %c0_8, %c0_9] : memref<2x16x80xf32, #tpu.memory_space<vmem>>, vector<1x16x80xf32>
    %10 = vector.shape_cast %9 : vector<1x16x80xf32> to vector<16x80xf32>
    %11 = vector.shape_cast %8 : vector<16x80xf32> to vector<1x16x80xf32>
    tpu.vector_store %arg5[%c0_7, %c0_8, %c0_9], %11 {strides = array<i32>} : memref<2x16x80xf32, #tpu.memory_space<vmem>>, vector<1x16x80xf32>,
    %c1 = arith.constant 1 : index
    %c0_10 = arith.constant 0 : index
    %c0_11 = arith.constant 0 : index
    %12 = vector.load %arg2[%c1, %c0_10, %c0_11] : memref<2x17x16xf32, #tpu.memory_space<vmem>>, vector<1x17x16xf32>
    %13 = vector.shape_cast %12 : vector<1x17x16xf32> to vector<17x16xf32>
    %cst_12 = arith.constant dense<0.000000e+00> : vector<16x80xf32>
    %14 = tpu.matmul %13, %0, %cst_12 {dimension_numbers = #tpu.dot_dimension_numbers<[0], [0], [1], [1], [0, 1, 1, 1], [], []>} : vector<17x16xf32>, vector<17x80xf32>, vector<16x80xf32> -> vector<16x80xf32>
    %15 = vector.broadcast %1 : vector<1x80xf32> to vector<16x80xf32>
    %16 = arith.addf %14, %15 : vector<16x80xf32>
    %cst_13 = arith.constant 0.000000e+00 : f32
    %17 = vector.broadcast %cst_13 : f32 to vector<16x80xf32>
    %18 = arith.maximumf %16, %17 : vector<16x80xf32>
    %c1_14 = arith.constant 1 : index
    %c0_15 = arith.constant 0 : index
    %c0_16 = arith.constant 0 : index
    %19 = vector.load %arg5[%c1_14, %c0_15, %c0_16] : memref<2x16x80xf32, #tpu.memory_space<vmem>>, vector<1x16x80xf32>
    %20 = vector.shape_cast %19 : vector<1x16x80xf32> to vector<16x80xf32>
    %21 = vector.shape_cast %18 : vector<16x80xf32> to vector<1x16x80xf32>
    tpu.vector_store %arg5[%c1_14, %c0_15, %c0_16], %21 {strides = array<i32>} : memref<2x16x80xf32, #tpu.memory_space<vmem>>, vector<1x16x80xf32>,
    return
  }
  func.func @transform_0(%arg0: i32, %arg1: i32) -> (i32, i32, i32) {
    %c0_i32 = arith.constant 0 : i32
    %c0_i32_0 = arith.constant 0 : i32
    return %arg0, %c0_i32, %arg1 : i32, i32, i32
  }
  func.func @transform_1(%arg0: i32, %arg1: i32) -> (i32, i32) {
    %c0_i32 = arith.constant 0 : i32
    %c0_i32_0 = arith.constant 0 : i32
    %c0_i32_1 = arith.constant 0 : i32
    return %c0_i32, %c0_i32_0 : i32, i32
  }
  func.func @transform_2(%arg0: i32, %arg1: i32) -> (i32, i32) {
    %c0_i32 = arith.constant 0 : i32
    %c0_i32_0 = arith.constant 0 : i32
    %c0_i32_1 = arith.constant 0 : i32
    return %c0_i32, %c0_i32_0 : i32, i32
  }
  func.func @transform_3(%arg0: i32, %arg1: i32) -> (i32, i32, i32) {
    %c0_i32 = arith.constant 0 : i32
    %c0_i32_0 = arith.constant 0 : i32
    return %arg0, %arg1, %c0_i32 : i32, i32, i32
  }
}

</mosaic_0001>

<llo_original>
// kernel: embedding_module_forward.2
$region0: #{embedding_module_forward.2}
  #allocation0 [shape = 'u32[]', space=smem, size = 0x4, offset = 0x4, fixed_abs, tag = 'smem constant byte address 0x4 - core index']
  #allocation1 [shape = 'u32[144,128]{1,0:T(1,128)}', space=vmem, size = 0x12000, scoped, tag = 'internal scratch']
  %s0 = inlined_call_operand.vmem [shape: f32[2,17,16], index: 0, kind: input, shape index: {}]
  %s1 = inlined_call_operand.vmem [shape: f32[17,1], index: 1, kind: input, shape index: {}]
  %s2 = inlined_call_operand.vmem [shape: f32[1,1,17], index: 2, kind: output, shape index: {0}]
  %s3 = inlined_call_operand.vmem [shape: f32[1,17,17], index: 3, kind: output, shape index: {1}]
  %4 = xla_tuple %s2, %s3
  %s5 = sld [smem:[#allocation0]]
  $region30: #{embedding_module_forward.2} parent=0
    _
  %s7 = ssub.s32 1, %s5
  %s8 = scalar_select 0, %s7, %s5
  // Predicated region
  $region2: #{embedding_module_forward.2} parent=0 // pred_check
    _
  $region3: #{embedding_module_forward.2} parent=0 // pred_check_branch
    %10 = sbr.rel (0) target = $region5
  $region4: #{embedding_module_forward.2} parent=0 // pred_region
    _
  $region5: #{embedding_module_forward.2} parent=0 // pred_fallthru
    _
  // Predicated region
  $region6: #{embedding_module_forward.2} parent=0 // pred_check
    _
  $region7: #{embedding_module_forward.2} parent=0 // pred_check_branch
    %12 = sbr.rel (0) target = $region9
  $region8: #{embedding_module_forward.2} parent=0 // pred_region
    _
  $region9: #{embedding_module_forward.2} parent=0 // pred_fallthru
    _
  %p13 = scmp.eq.s32.totalorder 0, 0
  // Predicated region
  $region10: #{embedding_module_forward.2} parent=0 // pred_check
    %p14 = pneg %p13
  $region11: #{embedding_module_forward.2} parent=0 // pred_check_branch
    %16 = sbr.rel (%p14) target = $region13
  $region12: #{embedding_module_forward.2} parent=0 // pred_region
    %vm17 = vcmask 131072
    %18 = vst.msk [vmem:[%s2] sm:$0x1] %vm17, 0.0
    %vm19 = vcmask 138240
    %20 = vst.msk [vmem:[%s3] sm:$0xff] %vm19, 0.0
    %21 = vst.msk [vmem:[%s3 + $0x8] sm:$0xff] %vm19, 0.0
    %22 = vst.msk [vmem:[%s3 + $0x10] sm:$0x1] %vm17, 0.0
  $region13: #{embedding_module_forward.2} parent=0 // pred_fallthru
    _
  %v23 = vld [vmem:[%s1] sm:$0xff]
  %v24 = vld [vmem:[%s1 + $0x8] sm:$0xff]
  %v25 = vld [vmem:[%s1 + $0x10] sm:$0x1]
  %v26 = vld [vmem:[%s0] sm:$0xff]
  %v27 = vld [vmem:[%s0 + $0x8] sm:$0xff]
  %v28 = vld [vmem:[%s0 + $0x10] sm:$0x1]
  %30 = vset.pattern.permute.xlu0 0
  %31 = vperm.xlu0 %30, %v23
  %v32 = vpop.permute.xlu0 %31
  %35 = vset.pattern.permute.xlu0 0
  %36 = vperm.xlu0 %35, %v24
  %v37 = vpop.permute.xlu0 %36
  %40 = vset.pattern.permute.xlu0 0
  %41 = vperm.xlu0 %40, %v25
  %v42 = vpop.permute.xlu0 %41
  %v44 = vsub.f32 %v26, %v32
  %v45 = vsub.f32 %v27, %v37
  %v46 = vsub.f32 %v28, %v42
  %v47 = vld [vmem:[%s2] sm:$0x1]
  %vm48 = vcmask 130048
  %v50 = vsel %vm48, 1.0, 0
  %v53 = vsel %vm48, %v44, 0
  %v56 = vsel %vm48, %v45, 0
  %v59 = vsel %vm48, %v46, 0
  %61 = vmatprep.subr.mxu0 0.0
  %62 = vmatpush1.xpose.msra.mxu0 0.0
  %63 = vmatprep.subr.mxu0 0.0
  %64 = vmatpush1.xpose.msra.mxu0 0.0
  %65 = vmatprep.subr.mxu0 0.0
  %66 = vmatpush1.xpose.msra.mxu0 0.0
  %67 = vmatprep.subr.mxu0 0.0
  %68 = vmatpush1.xpose.msra.mxu0 0.0
  %69 = vmatprep.subr.mxu0 0.0
  %70 = vmatpush1.xpose.msra.mxu0 0.0
  %71 = vmatprep.subr.mxu0 0.0
  %72 = vmatpush1.xpose.msra.mxu0 0.0
  %73 = vmatprep.subr.mxu0 0.0
  %74 = vmatpush1.xpose.msra.mxu0 0.0
  %75 = vmatprep.subr.mxu0 0.0
  %76 = vmatpush1.xpose.msra.mxu0 0.0
  %77 = vmatprep.subr.mxu0 0.0
  %78 = vmatpush1.xpose.msra.mxu0 0.0
  %79 = vmatprep.subr.mxu0 0.0
  %80 = vmatpush1.xpose.msra.mxu0 0.0
  %81 = vmatprep.subr.mxu0 0.0
  %82 = vmatpush1.xpose.msra.mxu0 0.0
  %83 = vmatprep.subr.mxu0 0.0
  %84 = vmatpush1.xpose.msra.mxu0 0.0
  %85 = vmatprep.subr.mxu0 0.0
  %86 = vmatpush1.xpose.msra.mxu0 0.0
  %87 = vmatprep.subr.mxu0 0.0
  %88 = vmatpush1.xpose.msra.mxu0 %v59
  %89 = vmatprep.subr.mxu0 0.0
  %90 = vmatpush1.xpose.msra.mxu0 %v56
  %91 = vmatprep.subr.mxu0 0.0
  %92 = vmatpush1.xpose.msra.mxu0 %v53
  %93 = vmatprep.subr.mxu0 0.0
  %94 = vmatpush2.xpose.msra.mxu0 0.0
  %95 = vmatprep.subr.mxu0 0.0
  %96 = vmatpush2.xpose.msra.mxu0 0.0
  %97 = vmatprep.subr.mxu0 0.0
  %98 = vmatpush2.xpose.msra.mxu0 0.0
  %99 = vmatprep.subr.mxu0 0.0
  %100 = vmatpush2.xpose.msra.mxu0 0.0
  %101 = vmatprep.subr.mxu0 0.0
  %102 = vmatpush2.xpose.msra.mxu0 0.0
  %103 = vmatprep.subr.mxu0 0.0
  %104 = vmatpush2.xpose.msra.mxu0 0.0
  %105 = vmatprep.subr.mxu0 0.0
  %106 = vmatpush2.xpose.msra.mxu0 0.0
  %107 = vmatprep.subr.mxu0 0.0
  %108 = vmatpush2.xpose.msra.mxu0 0.0
  %109 = vmatprep.subr.mxu0 0.0
  %110 = vmatpush2.xpose.msra.mxu0 0.0
  %111 = vmatprep.subr.mxu0 0.0
  %112 = vmatpush2.xpose.msra.mxu0 0.0
  %113 = vmatprep.subr.mxu0 0.0
  %114 = vmatpush2.xpose.msra.mxu0 0.0
  %115 = vmatprep.subr.mxu0 0.0
  %116 = vmatpush2.xpose.msra.mxu0 0.0
  %117 = vmatprep.subr.mxu0 0.0
  %118 = vmatpush2.xpose.msra.mxu0 0.0
  %119 = vmatprep.subr.mxu0 0.0
  %120 = vmatpush2.xpose.msra.mxu0 0.0
  %121 = vmatprep.subr.mxu0 0.0
  %122 = vmatpush2.xpose.msra.mxu0 0.0
  %123 = vmatprep.subr.mxu0 0.0
  %124 = vmatpush2.xpose.msra.mxu0 0.0
  %125 = vmatprep.mubr.f32.mxu0 0.0
  %126 = vmatmul.mubr.f32.gmra.mxu0 %v50
  %v127 = vpop.f32.mrf.mxu0
  %v128 = vadd.f32 0.0, %v127
  %v129 = vpop.f32.mrf.mxu0
  %130 = vdwg.mxu0
  %v131 = vadd.f32 %v47, %v128
  %vm132 = vcmask 131072
  %133 = vst.msk [vmem:[%s2] sm:$0x1] %vm132, %v131
  %v134 = vld [vmem:[%s3] sm:$0xff]
  %v135 = vld [vmem:[%s3 + $0x8] sm:$0xff]
  %v136 = vld [vmem:[%s3 + $0x10] sm:$0x1]
  %137 = vmatprep.subr.mxu0 0.0
  %138 = vmatpush1.xpose.msra.mxu0 0.0
  %139 = vmatprep.subr.mxu0 0.0
  %140 = vmatpush1.xpose.msra.mxu0 0.0
  %141 = vmatprep.subr.mxu0 0.0
  %142 = vmatpush1.xpose.msra.mxu0 0.0
  %143 = vmatprep.subr.mxu0 0.0
  %144 = vmatpush1.xpose.msra.mxu0 0.0
  %145 = vmatprep.subr.mxu0 0.0
  %146 = vmatpush1.xpose.msra.mxu0 0.0
  %147 = vmatprep.subr.mxu0 0.0
  %148 = vmatpush1.xpose.msra.mxu0 0.0
  %149 = vmatprep.subr.mxu0 0.0
  %150 = vmatpush1.xpose.msra.mxu0 0.0
  %151 = vmatprep.subr.mxu0 0.0
  %152 = vmatpush1.xpose.msra.mxu0 0.0
  %153 = vmatprep.subr.mxu0 0.0
  %154 = vmatpush1.xpose.msra.mxu0 0.0
  %155 = vmatprep.subr.mxu0 0.0
  %156 = vmatpush1.xpose.msra.mxu0 0.0
  %157 = vmatprep.subr.mxu0 0.0
  %158 = vmatpush1.xpose.msra.mxu0 0.0
  %159 = vmatprep.subr.mxu0 0.0
  %160 = vmatpush1.xpose.msra.mxu0 0.0
  %161 = vmatprep.subr.mxu0 0.0
  %162 = vmatpush1.xpose.msra.mxu0 0.0
  %163 = vmatprep.subr.mxu0 0.0
  %164 = vmatpush1.xpose.msra.mxu0 %v59
  %165 = vmatprep.subr.mxu0 0.0
  %166 = vmatpush1.xpose.msra.mxu0 %v56
  %167 = vmatprep.subr.mxu0 0.0
  %168 = vmatpush1.xpose.msra.mxu0 %v53
  %169 = vmatprep.subr.mxu0 0.0
  %170 = vmatpush2.xpose.msra.mxu0 0.0
  %171 = vmatprep.subr.mxu0 0.0
  %172 = vmatpush2.xpose.msra.mxu0 0.0
  %173 = vmatprep.subr.mxu0 0.0
  %174 = vmatpush2.xpose.msra.mxu0 0.0
  %175 = vmatprep.subr.mxu0 0.0
  %176 = vmatpush2.xpose.msra.mxu0 0.0
  %177 = vmatprep.subr.mxu0 0.0
  %178 = vmatpush2.xpose.msra.mxu0 0.0
  %179 = vmatprep.subr.mxu0 0.0
  %180 = vmatpush2.xpose.msra.mxu0 0.0
  %181 = vmatprep.subr.mxu0 0.0
  %182 = vmatpush2.xpose.msra.mxu0 0.0
  %183 = vmatprep.subr.mxu0 0.0
  %184 = vmatpush2.xpose.msra.mxu0 0.0
  %185 = vmatprep.subr.mxu0 0.0
  %186 = vmatpush2.xpose.msra.mxu0 0.0
  %187 = vmatprep.subr.mxu0 0.0
  %188 = vmatpush2.xpose.msra.mxu0 0.0
  %189 = vmatprep.subr.mxu0 0.0
  %190 = vmatpush2.xpose.msra.mxu0 0.0
  %191 = vmatprep.subr.mxu0 0.0
  %192 = vmatpush2.xpose.msra.mxu0 0.0
  %193 = vmatprep.subr.mxu0 0.0
  %194 = vmatpush2.xpose.msra.mxu0 0.0
  %195 = vmatprep.subr.mxu0 0.0
  %196 = vmatpush2.xpose.msra.mxu0 0.0
  %197 = vmatprep.subr.mxu0 0.0
  %198 = vmatpush2.xpose.msra.mxu0 0.0
  %199 = vmatprep.subr.mxu0 0.0
  %200 = vmatpush2.xpose.msra.mxu0 0.0
  %201 = vmatprep.mubr.f32.mxu0 0.0
  %202 = vmatmul.mubr.f32.gmra.mxu0 %v53
  %v203 = vpop.f32.mrf.mxu0
  %v204 = vadd.f32 0.0, %v203
  %v205 = vpop.f32.mrf.mxu0
  %206 = vmatprep.mubr.f32.mxu0 0.0
  %207 = vmatmul.mubr.f32.gmra.mxu0 %v56
  %v208 = vpop.f32.mrf.mxu0
  %v209 = vadd.f32 0.0, %v208
  %v210 = vpop.f32.mrf.mxu0
  %211 = vmatprep.mubr.f32.mxu0 0.0
  %212 = vmatmul.mubr.f32.gmra.mxu0 %v59
  %v213 = vpop.f32.mrf.mxu0
  %v214 = vadd.f32 0.0, %v213
  %v215 = vpop.f32.mrf.mxu0
  %216 = vdwg.mxu0
  %v217 = vadd.f32 %v134, %v204
  %v218 = vadd.f32 %v135, %v209
  %v219 = vadd.f32 %v136, %v214
  %vm220 = vcmask 138240
  %221 = vst.msk [vmem:[%s3] sm:$0xff] %vm220, %v217
  %222 = vst.msk [vmem:[%s3 + $0x8] sm:$0xff] %vm220, %v218
  %223 = vst.msk [vmem:[%s3 + $0x10] sm:$0x1] %vm132, %v219
  %s224 = scalar_lea.vmem %s0, 24
  %v225 = vld [vmem:[%s224] sm:$0xff]
  %v226 = vld [vmem:[%s224 + $0x8] sm:$0xff]
  %v227 = vld [vmem:[%s224 + $0x10] sm:$0x1]
  %v228 = vsub.f32 %v225, %v32
  %v229 = vsub.f32 %v226, %v37
  %v230 = vsub.f32 %v227, %v42
  %v231 = vld [vmem:[%s2] sm:$0x1]
  %v233 = vsel %vm48, %v228, 0
  %v236 = vsel %vm48, %v229, 0
  %v239 = vsel %vm48, %v230, 0
  %241 = vmatprep.subr.mxu0 0.0
  %242 = vmatpush1.xpose.msra.mxu0 0.0
  %243 = vmatprep.subr.mxu0 0.0
  %244 = vmatpush1.xpose.msra.mxu0 0.0
  %245 = vmatprep.subr.mxu0 0.0
  %246 = vmatpush1.xpose.msra.mxu0 0.0
  %247 = vmatprep.subr.mxu0 0.0
  %248 = vmatpush1.xpose.msra.mxu0 0.0
  %249 = vmatprep.subr.mxu0 0.0
  %250 = vmatpush1.xpose.msra.mxu0 0.0
  %251 = vmatprep.subr.mxu0 0.0
  %252 = vmatpush1.xpose.msra.mxu0 0.0
  %253 = vmatprep.subr.mxu0 0.0
  %254 = vmatpush1.xpose.msra.mxu0 0.0
  %255 = vmatprep.subr.mxu0 0.0
  %256 = vmatpush1.xpose.msra.mxu0 0.0
  %257 = vmatprep.subr.mxu0 0.0
  %258 = vmatpush1.xpose.msra.mxu0 0.0
  %259 = vmatprep.subr.mxu0 0.0
  %260 = vmatpush1.xpose.msra.mxu0 0.0
  %261 = vmatprep.subr.mxu0 0.0
  %262 = vmatpush1.xpose.msra.mxu0 0.0
  %263 = vmatprep.subr.mxu0 0.0
  %264 = vmatpush1.xpose.msra.mxu0 0.0
  %265 = vmatprep.subr.mxu0 0.0
  %266 = vmatpush1.xpose.msra.mxu0 0.0
  %267 = vmatprep.subr.mxu0 0.0
  %268 = vmatpush1.xpose.msra.mxu0 %v239
  %269 = vmatprep.subr.mxu0 0.0
  %270 = vmatpush1.xpose.msra.mxu0 %v236
  %271 = vmatprep.subr.mxu0 0.0
  %272 = vmatpush1.xpose.msra.mxu0 %v233
  %273 = vmatprep.subr.mxu0 0.0
  %274 = vmatpush2.xpose.msra.mxu0 0.0
  %275 = vmatprep.subr.mxu0 0.0
  %276 = vmatpush2.xpose.msra.mxu0 0.0
  %277 = vmatprep.subr.mxu0 0.0
  %278 = vmatpush2.xpose.msra.mxu0 0.0
  %279 = vmatprep.subr.mxu0 0.0
  %280 = vmatpush2.xpose.msra.mxu0 0.0
  %281 = vmatprep.subr.mxu0 0.0
  %282 = vmatpush2.xpose.msra.mxu0 0.0
  %283 = vmatprep.subr.mxu0 0.0
  %284 = vmatpush2.xpose.msra.mxu0 0.0
  %285 = vmatprep.subr.mxu0 0.0
  %286 = vmatpush2.xpose.msra.mxu0 0.0
  %287 = vmatprep.subr.mxu0 0.0
  %288 = vmatpush2.xpose.msra.mxu0 0.0
  %289 = vmatprep.subr.mxu0 0.0
  %290 = vmatpush2.xpose.msra.mxu0 0.0
  %291 = vmatprep.subr.mxu0 0.0
  %292 = vmatpush2.xpose.msra.mxu0 0.0
  %293 = vmatprep.subr.mxu0 0.0
  %294 = vmatpush2.xpose.msra.mxu0 0.0
  %295 = vmatprep.subr.mxu0 0.0
  %296 = vmatpush2.xpose.msra.mxu0 0.0
  %297 = vmatprep.subr.mxu0 0.0
  %298 = vmatpush2.xpose.msra.mxu0 0.0
  %299 = vmatprep.subr.mxu0 0.0
  %300 = vmatpush2.xpose.msra.mxu0 0.0
  %301 = vmatprep.subr.mxu0 0.0
  %302 = vmatpush2.xpose.msra.mxu0 0.0
  %303 = vmatprep.subr.mxu0 0.0
  %304 = vmatpush2.xpose.msra.mxu0 0.0
  %305 = vmatprep.mubr.f32.mxu0 0.0
  %306 = vmatmul.mubr.f32.gmra.mxu0 %v50
  %v307 = vpop.f32.mrf.mxu0
  %v308 = vadd.f32 0.0, %v307
  %v309 = vpop.f32.mrf.mxu0
  %310 = vdwg.mxu0
  %v311 = vadd.f32 %v231, %v308
  %312 = vst.msk [vmem:[%s2] sm:$0x1] %vm132, %v311
  %v313 = vld [vmem:[%s3] sm:$0xff]
  %v314 = vld [vmem:[%s3 + $0x8] sm:$0xff]
  %v315 = vld [vmem:[%s3 + $0x10] sm:$0x1]
  %316 = vmatprep.subr.mxu0 0.0
  %317 = vmatpush1.xpose.msra.mxu0 0.0
  %318 = vmatprep.subr.mxu0 0.0
  %319 = vmatpush1.xpose.msra.mxu0 0.0
  %320 = vmatprep.subr.mxu0 0.0
  %321 = vmatpush1.xpose.msra.mxu0 0.0
  %322 = vmatprep.subr.mxu0 0.0
  %323 = vmatpush1.xpose.msra.mxu0 0.0
  %324 = vmatprep.subr.mxu0 0.0
  %325 = vmatpush1.xpose.msra.mxu0 0.0
  %326 = vmatprep.subr.mxu0 0.0
  %327 = vmatpush1.xpose.msra.mxu0 0.0
  %328 = vmatprep.subr.mxu0 0.0
  %329 = vmatpush1.xpose.msra.mxu0 0.0
  %330 = vmatprep.subr.mxu0 0.0
  %331 = vmatpush1.xpose.msra.mxu0 0.0
  %332 = vmatprep.subr.mxu0 0.0
  %333 = vmatpush1.xpose.msra.mxu0 0.0
  %334 = vmatprep.subr.mxu0 0.0
  %335 = vmatpush1.xpose.msra.mxu0 0.0
  %336 = vmatprep.subr.mxu0 0.0
  %337 = vmatpush1.xpose.msra.mxu0 0.0
  %338 = vmatprep.subr.mxu0 0.0
  %339 = vmatpush1.xpose.msra.mxu0 0.0
  %340 = vmatprep.subr.mxu0 0.0
  %341 = vmatpush1.xpose.msra.mxu0 0.0
  %342 = vmatprep.subr.mxu0 0.0
  %343 = vmatpush1.xpose.msra.mxu0 %v239
  %344 = vmatprep.subr.mxu0 0.0
  %345 = vmatpush1.xpose.msra.mxu0 %v236
  %346 = vmatprep.subr.mxu0 0.0
  %347 = vmatpush1.xpose.msra.mxu0 %v233
  %348 = vmatprep.subr.mxu0 0.0
  %349 = vmatpush2.xpose.msra.mxu0 0.0
  %350 = vmatprep.subr.mxu0 0.0
  %351 = vmatpush2.xpose.msra.mxu0 0.0
  %352 = vmatprep.subr.mxu0 0.0
  %353 = vmatpush2.xpose.msra.mxu0 0.0
  %354 = vmatprep.subr.mxu0 0.0
  %355 = vmatpush2.xpose.msra.mxu0 0.0
  %356 = vmatprep.subr.mxu0 0.0
  %357 = vmatpush2.xpose.msra.mxu0 0.0
  %358 = vmatprep.subr.mxu0 0.0
  %359 = vmatpush2.xpose.msra.mxu0 0.0
  %360 = vmatprep.subr.mxu0 0.0
  %361 = vmatpush2.xpose.msra.mxu0 0.0
  %362 = vmatprep.subr.mxu0 0.0
  %363 = vmatpush2.xpose.msra.mxu0 0.0
  %364 = vmatprep.subr.mxu0 0.0
  %365 = vmatpush2.xpose.msra.mxu0 0.0
  %366 = vmatprep.subr.mxu0 0.0
  %367 = vmatpush2.xpose.msra.mxu0 0.0
  %368 = vmatprep.subr.mxu0 0.0
  %369 = vmatpush2.xpose.msra.mxu0 0.0
  %370 = vmatprep.subr.mxu0 0.0
  %371 = vmatpush2.xpose.msra.mxu0 0.0
  %372 = vmatprep.subr.mxu0 0.0
  %373 = vmatpush2.xpose.msra.mxu0 0.0
  %374 = vmatprep.subr.mxu0 0.0
  %375 = vmatpush2.xpose.msra.mxu0 0.0
  %376 = vmatprep.subr.mxu0 0.0
  %377 = vmatpush2.xpose.msra.mxu0 0.0
  %378 = vmatprep.subr.mxu0 0.0
  %379 = vmatpush2.xpose.msra.mxu0 0.0
  %380 = vmatprep.mubr.f32.mxu0 0.0
  %381 = vmatmul.mubr.f32.gmra.mxu0 %v233
  %v382 = vpop.f32.mrf.mxu0
  %v383 = vadd.f32 0.0, %v382
  %v384 = vpop.f32.mrf.mxu0
  %385 = vmatprep.mubr.f32.mxu0 0.0
  %386 = vmatmul.mubr.f32.gmra.mxu0 %v236
  %v387 = vpop.f32.mrf.mxu0
  %v388 = vadd.f32 0.0, %v387
  %v389 = vpop.f32.mrf.mxu0
  %390 = vmatprep.mubr.f32.mxu0 0.0
  %391 = vmatmul.mubr.f32.gmra.mxu0 %v239
  %v392 = vpop.f32.mrf.mxu0
  %v393 = vadd.f32 0.0, %v392
  %v394 = vpop.f32.mrf.mxu0
  %395 = vdwg.mxu0
  %v396 = vadd.f32 %v313, %v383
  %v397 = vadd.f32 %v314, %v388
  %v398 = vadd.f32 %v315, %v393
  %399 = vst.msk [vmem:[%s3] sm:$0xff] %vm220, %v396
  %400 = vst.msk [vmem:[%s3 + $0x8] sm:$0xff] %vm220, %v397
  %401 = vst.msk [vmem:[%s3 + $0x10] sm:$0x1] %vm132, %v398
  // Predicated region
  $region14: #{embedding_module_forward.2} parent=0 // pred_check
    _
  $region15: #{embedding_module_forward.2} parent=0 // pred_check_branch
    %403 = sbr.rel (0) target = $region17
  $region16: #{embedding_module_forward.2} parent=0 // pred_region
    _
  $region17: #{embedding_module_forward.2} parent=0 // pred_fallthru
    _
  // Predicated region
  $region18: #{embedding_module_forward.2} parent=0 // pred_check
    _
  $region19: #{embedding_module_forward.2} parent=0 // pred_check_branch
    %405 = sbr.rel (0) target = $region21
  $region20: #{embedding_module_forward.2} parent=0 // pred_region
    _
  $region21: #{embedding_module_forward.2} parent=0 // pred_fallthru
    _
  // Predicated region
  $region22: #{embedding_module_forward.2} parent=0 // pred_check
    _
  $region23: #{embedding_module_forward.2} parent=0 // pred_check_branch
    %407 = sbr.rel (0) target = $region25
  $region24: #{embedding_module_forward.2} parent=0 // pred_region
    _
  $region25: #{embedding_module_forward.2} parent=0 // pred_fallthru
    _
  // Predicated region
  $region26: #{embedding_module_forward.2} parent=0 // pred_check
    _
  $region27: #{embedding_module_forward.2} parent=0 // pred_check_branch
    %409 = sbr.rel (0) target = $region29
  $region28: #{embedding_module_forward.2} parent=0 // pred_region
    _
  $region29: #{embedding_module_forward.2} parent=0 // pred_fallthru
    _

// kernel: embedding_module_forward.3
$region0: #{embedding_module_forward.3}
  #allocation0 [shape = 'u32[]', space=smem, size = 0x4, offset = 0x4, fixed_abs, tag = 'smem constant byte address 0x4 - core index']
  #allocation1 [shape = 'u32[144,128]{1,0:T(1,128)}', space=vmem, size = 0x12000, scoped, tag = 'internal scratch']
  %s0 = inlined_call_operand.vmem [shape: f32[2,17,16], index: 0, kind: input, shape index: {}]
  %s1 = inlined_call_operand.vmem [shape: f32[17,80], index: 1, kind: input, shape index: {}]
  %s2 = inlined_call_operand.vmem [shape: f32[1,80], index: 2, kind: input, shape index: {}]
  %s3 = inlined_call_operand.hbm [shape: f32[2,16,80], index: 3, kind: output, shape index: {}]
  %s4 = sld [smem:[#allocation0]]
  $region22: #{embedding_module_forward.3} parent=0
    _
  %s6 = ssub.s32 1, %s4
  %s7 = scalar_select 0, %s6, %s4
  $region1: #{embedding_module_forward.3} parent=0
    #allocation2 [shape = 'u8[16384]{0}', space=vmem, size = 0x4000, scoped, tag = 'output window, operand 0, single buffered']
    #allocation3 [shape = 's32[1]{0}', space=sflag, size = 0x4, scoped, tag = 'scoped memory for embedding_module_forward.3']
    %8 = vsyncpa [#allocation3], 0
    // Predicated region
    $region2: #{embedding_module_forward.3} parent=1 // pred_check
      _
    $region3: #{embedding_module_forward.3} parent=1 // pred_check_branch
      %10 = sbr.rel (0) target = $region5
    $region4: #{embedding_module_forward.3} parent=1 // pred_region
      _
    $region5: #{embedding_module_forward.3} parent=1 // pred_fallthru
      _
    // Predicated region
    $region6: #{embedding_module_forward.3} parent=1 // pred_check
      _
    $region7: #{embedding_module_forward.3} parent=1 // pred_check_branch
      %12 = sbr.rel (0) target = $region9
    $region8: #{embedding_module_forward.3} parent=1 // pred_region
      _
    $region9: #{embedding_module_forward.3} parent=1 // pred_fallthru
      _
    // Predicated region
    $region10: #{embedding_module_forward.3} parent=1 // pred_check
      _
    $region11: #{embedding_module_forward.3} parent=1 // pred_check_branch
      %14 = sbr.rel (0) target = $region13
    $region12: #{embedding_module_forward.3} parent=1 // pred_region
      _
    $region13: #{embedding_module_forward.3} parent=1 // pred_fallthru
      _
    %v15 = vld [vmem:[%s1] sm:$0xff]
    %v16 = vld [vmem:[%s1 + $0x8] sm:$0xff]
    %v17 = vld [vmem:[%s1 + $0x10] sm:$0x1]
    %v18 = vld [vmem:[%s2] sm:$0x1]
    %v19 = vld [vmem:[%s0] sm:$0xff]
    %v20 = vld [vmem:[%s0 + $0x8] sm:$0xff]
    %v21 = vld [vmem:[%s0 + $0x10] sm:$0x1]
    %v23 = vlaneseq
    %v24 = vshrl.u32 %v23, 7
    %v25 = vsub.s32 0, %v24
    %v26 = vrot.slane %v18, %v25
    %28 = vxpose.xlu0.b32.start [1/16] %v19, 128
    %29 = vxpose.xlu0.b32.cont [2/16] %v20, 128
    %30 = vxpose.xlu0.b32.cont [3/16] %v21, 128
    %31 = vxpose.xlu0.b32.cont [4/16] 0.0, 128
    %32 = vxpose.xlu0.b32.cont [5/16] 0.0, 128
    %33 = vxpose.xlu0.b32.cont [6/16] 0.0, 128
    %34 = vxpose.xlu0.b32.cont [7/16] 0.0, 128
    %35 = vxpose.xlu0.b32.cont [8/16] 0.0, 128
    %36 = vxpose.xlu0.b32.cont [9/16] 0.0, 128
    %37 = vxpose.xlu0.b32.cont [10/16] 0.0, 128
    %38 = vxpose.xlu0.b32.cont [11/16] 0.0, 128
    %39 = vxpose.xlu0.b32.cont [12/16] 0.0, 128
    %40 = vxpose.xlu0.b32.cont [13/16] 0.0, 128
    %41 = vxpose.xlu0.b32.cont [14/16] 0.0, 128
    %42 = vxpose.xlu0.b32.cont [15/16] 0.0, 128
    %43 = vxpose.xlu0.b32.end [16/16] 0.0, 128
    %v44 = vpop.trf.xlu0
    %v45 = vpop.trf.xlu0
    %v46 = vpop.trf.xlu0
    %v47 = vpop.trf.xlu0
    %v48 = vpop.trf.xlu0
    %v49 = vpop.trf.xlu0
    %v50 = vpop.trf.xlu0
    %v51 = vpop.trf.xlu0
    %v52 = vpop.trf.xlu0
    %v53 = vpop.trf.xlu0
    %v54 = vpop.trf.xlu0
    %v55 = vpop.trf.xlu0
    %v56 = vpop.trf.xlu0
    %v57 = vpop.trf.xlu0
    %v58 = vpop.trf.xlu0
    %v59 = vpop.trf.xlu0
    %vm60 = vcmask 138240
    %v62 = vsel %vm60, %v44, 0
    %v65 = vsel %vm60, %v45, 0
    %vm67 = vcmask 1040384
    %v69 = vsel %vm67, %v17, 0
    %71 = vmatprep.subr.mxu0 0.0
    %72 = vmatpush1.msra.mxu0 0.0
    %73 = vmatprep.subr.mxu0 0.0
    %74 = vmatpush1.msra.mxu0 0.0
    %75 = vmatprep.subr.mxu0 0.0
    %76 = vmatpush1.msra.mxu0 0.0
    %77 = vmatprep.subr.mxu0 0.0
    %78 = vmatpush1.msra.mxu0 0.0
    %79 = vmatprep.subr.mxu0 0.0
    %80 = vmatpush1.msra.mxu0 0.0
    %81 = vmatprep.subr.mxu0 0.0
    %82 = vmatpush1.msra.mxu0 0.0
    %83 = vmatprep.subr.mxu0 0.0
    %84 = vmatpush1.msra.mxu0 0.0
    %85 = vmatprep.subr.mxu0 0.0
    %86 = vmatpush1.msra.mxu0 0.0
    %87 = vmatprep.subr.mxu0 0.0
    %88 = vmatpush1.msra.mxu0 0.0
    %89 = vmatprep.subr.mxu0 0.0
    %90 = vmatpush1.msra.mxu0 0.0
    %91 = vmatprep.subr.mxu0 0.0
    %92 = vmatpush1.msra.mxu0 0.0
    %93 = vmatprep.subr.mxu0 0.0
    %94 = vmatpush1.msra.mxu0 0.0
    %95 = vmatprep.subr.mxu0 0.0
    %96 = vmatpush1.msra.mxu0 0.0
    %97 = vmatprep.subr.mxu0 0.0
    %98 = vmatpush1.msra.mxu0 %v69
    %99 = vmatprep.subr.mxu0 0.0
    %100 = vmatpush1.msra.mxu0 %v16
    %101 = vmatprep.subr.mxu0 0.0
    %102 = vmatpush1.msra.mxu0 %v15
    %103 = vmatprep.subr.mxu0 0.0
    %104 = vmatpush2.msra.mxu0 0.0
    %105 = vmatprep.subr.mxu0 0.0
    %106 = vmatpush2.msra.mxu0 0.0
    %107 = vmatprep.subr.mxu0 0.0
    %108 = vmatpush2.msra.mxu0 0.0
    %109 = vmatprep.subr.mxu0 0.0
    %110 = vmatpush2.msra.mxu0 0.0
    %111 = vmatprep.subr.mxu0 0.0
    %112 = vmatpush2.msra.mxu0 0.0
    %113 = vmatprep.subr.mxu0 0.0
    %114 = vmatpush2.msra.mxu0 0.0
    %115 = vmatprep.subr.mxu0 0.0
    %116 = vmatpush2.msra.mxu0 0.0
    %117 = vmatprep.subr.mxu0 0.0
    %118 = vmatpush2.msra.mxu0 0.0
    %119 = vmatprep.subr.mxu0 0.0
    %120 = vmatpush2.msra.mxu0 0.0
    %121 = vmatprep.subr.mxu0 0.0
    %122 = vmatpush2.msra.mxu0 0.0
    %123 = vmatprep.subr.mxu0 0.0
    %124 = vmatpush2.msra.mxu0 0.0
    %125 = vmatprep.subr.mxu0 0.0
    %126 = vmatpush2.msra.mxu0 0.0
    %127 = vmatprep.subr.mxu0 0.0
    %128 = vmatpush2.msra.mxu0 0.0
    %129 = vmatprep.subr.mxu0 0.0
    %130 = vmatpush2.msra.mxu0 0.0
    %131 = vmatprep.subr.mxu0 0.0
    %132 = vmatpush2.msra.mxu0 0.0
    %133 = vmatprep.subr.mxu0 0.0
    %134 = vmatpush2.msra.mxu0 0.0
    %135 = vmatprep.mubr.f32.mxu0 0.0
    %136 = vmatmul.mubr.f32.gmra.mxu0 %v62
    %v137 = vpop.f32.mrf.mxu0
    %v138 = vadd.f32 %v26, %v137
    %v139 = vpop.f32.mrf.mxu0
    %140 = vmatprep.mubr.f32.mxu0 0.0
    %141 = vmatmul.mubr.f32.gmra.mxu0 %v65
    %v142 = vpop.f32.mrf.mxu0
    %v143 = vadd.f32 %v26, %v142
    %v144 = vpop.f32.mrf.mxu0
    %145 = vdwg.mxu0
    %v146 = vmax.f32 %v138, 0.0
    %v147 = vmax.f32 %v143, 0.0
    %vm148 = vcmask 654336
    %149 = vst.msk [vmem:[#allocation2] sm:$0xff] %vm148, %v146
    %150 = vst.msk [vmem:[#allocation2 + $0x8] sm:$0xff] %vm148, %v147
    %s151 = scalar_lea.vmem %s0, 24
    %v152 = vld [vmem:[%s151] sm:$0xff]
    %v153 = vld [vmem:[%s151 + $0x8] sm:$0xff]
    %v154 = vld [vmem:[%s151 + $0x10] sm:$0x1]
    %155 = vxpose.xlu0.b32.start [1/16] %v152, 128
    %156 = vxpose.xlu0.b32.cont [2/16] %v153, 128
    %157 = vxpose.xlu0.b32.cont [3/16] %v154, 128
    %158 = vxpose.xlu0.b32.cont [4/16] 0.0, 128
    %159 = vxpose.xlu0.b32.cont [5/16] 0.0, 128
    %160 = vxpose.xlu0.b32.cont [6/16] 0.0, 128
    %161 = vxpose.xlu0.b32.cont [7/16] 0.0, 128
    %162 = vxpose.xlu0.b32.cont [8/16] 0.0, 128
    %163 = vxpose.xlu0.b32.cont [9/16] 0.0, 128
    %164 = vxpose.xlu0.b32.cont [10/16] 0.0, 128
    %165 = vxpose.xlu0.b32.cont [11/16] 0.0, 128
    %166 = vxpose.xlu0.b32.cont [12/16] 0.0, 128
    %167 = vxpose.xlu0.b32.cont [13/16] 0.0, 128
    %168 = vxpose.xlu0.b32.cont [14/16] 0.0, 128
    %169 = vxpose.xlu0.b32.cont [15/16] 0.0, 128
    %170 = vxpose.xlu0.b32.end [16/16] 0.0, 128
    %v171 = vpop.trf.xlu0
    %v172 = vpop.trf.xlu0
    %v173 = vpop.trf.xlu0
    %v174 = vpop.trf.xlu0
    %v175 = vpop.trf.xlu0
    %v176 = vpop.trf.xlu0
    %v177 = vpop.trf.xlu0
    %v178 = vpop.trf.xlu0
    %v179 = vpop.trf.xlu0
    %v180 = vpop.trf.xlu0
    %v181 = vpop.trf.xlu0
    %v182 = vpop.trf.xlu0
    %v183 = vpop.trf.xlu0
    %v184 = vpop.trf.xlu0
    %v185 = vpop.trf.xlu0
    %v186 = vpop.trf.xlu0
    %v188 = vsel %vm60, %v171, 0
    %v191 = vsel %vm60, %v172, 0
    %193 = vmatprep.subr.mxu0 0.0
    %194 = vmatpush1.msra.mxu0 0.0
    %195 = vmatprep.subr.mxu0 0.0
    %196 = vmatpush1.msra.mxu0 0.0
    %197 = vmatprep.subr.mxu0 0.0
    %198 = vmatpush1.msra.mxu0 0.0
    %199 = vmatprep.subr.mxu0 0.0
    %200 = vmatpush1.msra.mxu0 0.0
    %201 = vmatprep.subr.mxu0 0.0
    %202 = vmatpush1.msra.mxu0 0.0
    %203 = vmatprep.subr.mxu0 0.0
    %204 = vmatpush1.msra.mxu0 0.0
    %205 = vmatprep.subr.mxu0 0.0
    %206 = vmatpush1.msra.mxu0 0.0
    %207 = vmatprep.subr.mxu0 0.0
    %208 = vmatpush1.msra.mxu0 0.0
    %209 = vmatprep.subr.mxu0 0.0
    %210 = vmatpush1.msra.mxu0 0.0
    %211 = vmatprep.subr.mxu0 0.0
    %212 = vmatpush1.msra.mxu0 0.0
    %213 = vmatprep.subr.mxu0 0.0
    %214 = vmatpush1.msra.mxu0 0.0
    %215 = vmatprep.subr.mxu0 0.0
    %216 = vmatpush1.msra.mxu0 0.0
    %217 = vmatprep.subr.mxu0 0.0
    %218 = vmatpush1.msra.mxu0 0.0
    %219 = vmatprep.subr.mxu0 0.0
    %220 = vmatpush1.msra.mxu0 %v69
    %221 = vmatprep.subr.mxu0 0.0
    %222 = vmatpush1.msra.mxu0 %v16
    %223 = vmatprep.subr.mxu0 0.0
    %224 = vmatpush1.msra.mxu0 %v15
    %225 = vmatprep.subr.mxu0 0.0
    %226 = vmatpush2.msra.mxu0 0.0
    %227 = vmatprep.subr.mxu0 0.0
    %228 = vmatpush2.msra.mxu0 0.0
    %229 = vmatprep.subr.mxu0 0.0
    %230 = vmatpush2.msra.mxu0 0.0
    %231 = vmatprep.subr.mxu0 0.0
    %232 = vmatpush2.msra.mxu0 0.0
    %233 = vmatprep.subr.mxu0 0.0
    %234 = vmatpush2.msra.mxu0 0.0
    %235 = vmatprep.subr.mxu0 0.0
    %236 = vmatpush2.msra.mxu0 0.0
    %237 = vmatprep.subr.mxu0 0.0
    %238 = vmatpush2.msra.mxu0 0.0
    %239 = vmatprep.subr.mxu0 0.0
    %240 = vmatpush2.msra.mxu0 0.0
    %241 = vmatprep.subr.mxu0 0.0
    %242 = vmatpush2.msra.mxu0 0.0
    %243 = vmatprep.subr.mxu0 0.0
    %244 = vmatpush2.msra.mxu0 0.0
    %245 = vmatprep.subr.mxu0 0.0
    %246 = vmatpush2.msra.mxu0 0.0
    %247 = vmatprep.subr.mxu0 0.0
    %248 = vmatpush2.msra.mxu0 0.0
    %249 = vmatprep.subr.mxu0 0.0
    %250 = vmatpush2.msra.mxu0 0.0
    %251 = vmatprep.subr.mxu0 0.0
    %252 = vmatpush2.msra.mxu0 0.0
    %253 = vmatprep.subr.mxu0 0.0
    %254 = vmatpush2.msra.mxu0 0.0
    %255 = vmatprep.subr.mxu0 0.0
    %256 = vmatpush2.msra.mxu0 0.0
    %257 = vmatprep.mubr.f32.mxu0 0.0
    %258 = vmatmul.mubr.f32.gmra.mxu0 %v188
    %v259 = vpop.f32.mrf.mxu0
    %v260 = vadd.f32 %v26, %v259
    %v261 = vpop.f32.mrf.mxu0
    %262 = vmatprep.mubr.f32.mxu0 0.0
    %263 = vmatmul.mubr.f32.gmra.mxu0 %v191
    %v264 = vpop.f32.mrf.mxu0
    %v265 = vadd.f32 %v26, %v264
    %v266 = vpop.f32.mrf.mxu0
    %267 = vdwg.mxu0
    %v268 = vmax.f32 %v260, 0.0
    %v269 = vmax.f32 %v265, 0.0
    %s270 = scalar_lea.vmem [#allocation2], 16
    %271 = vst.msk [vmem:[%s270] sm:$0xff] %vm148, %v268
    %272 = vst.msk [vmem:[%s270 + $0x8] sm:$0xff] %vm148, %v269
    // Predicated region
    $region14: #{embedding_module_forward.3} parent=1 // pred_check
      _
    $region15: #{embedding_module_forward.3} parent=1 // pred_check_branch
      %274 = sbr.rel (0) target = $region17
    $region16: #{embedding_module_forward.3} parent=1 // pred_region
      %s276 = ssub.s32 512, 512
      %277 = vsyncadd [#allocation3], %s276
      %s278 = sshll.u32 [#allocation2], 4
      %s279 = int_to_ptr.vmem [resolvable:$true] %s278
      %284 = dma.vmem_to_hbm [thread:$0]  %s279, 512, %s3, [#allocation3], 128, 128, 8
    $region17: #{embedding_module_forward.3} parent=1 // pred_fallthru
      _
    // Predicated region
    $region18: #{embedding_module_forward.3} parent=1 // pred_check
      _
    $region19: #{embedding_module_forward.3} parent=1 // pred_check_branch
      %286 = sbr.rel (0) target = $region21
    $region20: #{embedding_module_forward.3} parent=1 // pred_region
      %287 = dma.done [#allocation3], 512
    $region21: #{embedding_module_forward.3} parent=1 // pred_fallthru
      _
    %288 = vsyncpa [#allocation3], 1

</llo_original>
